<compile_context>
chip_gen: v5e
topology: v5e:2x2
jax: 0.10.0
libtpu: 0.0.40
codegen_flags: <defaults>
</compile_context>

<pallas_src>
import jax
import jax.numpy as jnp
from jax.experimental import pallas as pl
from jax.experimental.pallas import tpu as pltpu


def _round_up(a, b):
    return ((a + b - 1) // b) * b


def _cdiv(a, b):
    return (a + b - 1) // b


def _vmem_capacity_bytes():
    """Physical VMEM per TensorCore; conservative 64 MiB if the query fails."""
    try:
        return int(pltpu.get_tpu_info().vmem_capacity_bytes)
    except Exception:
        return 64 << 20


def _mlp_kernel_resident(x_ref, w1_ref, b1_ref, w2_ref, b2_ref, o_ref):
    """One (tile_m, L) output stripe of relu(x@w1+b1)@w2+b2, weights resident."""
    h = jnp.dot(x_ref[...], w1_ref[...], preferred_element_type=jnp.float32)
    h = jnp.maximum(h + b1_ref[...], 0.0)            # bias + ReLU in f32 (VPU)
    y = jnp.dot(h.astype(w2_ref.dtype), w2_ref[...],
                preferred_element_type=jnp.float32)
    o_ref[...] = (y + b2_ref[...]).astype(o_ref.dtype)


def _mlp_kernel_tiled(x_ref, w1_ref, b1_ref, w2_ref, b2_ref, o_ref, h_ref):
    """One (tile_m, tile_n) output tile.  Grid = (row tiles, L-column tiles).

    The hidden activation only depends on the row tile, so it is computed once
    at j == 0 into a VMEM scratch and reused for every column tile of the same
    row tile.
    """
    @pl.when(pl.program_id(1) == 0)
    def _():
        h = jnp.dot(x_ref[...], w1_ref[...], preferred_element_type=jnp.float32)
        h_ref[...] = jnp.maximum(h + b1_ref[...], 0.0).astype(h_ref.dtype)

    y = jnp.dot(h_ref[...], w2_ref[...], preferred_element_type=jnp.float32)
    o_ref[...] = (y + b2_ref[...]).astype(o_ref.dtype)


def _pick_tile_n(L, want):
    """Column tile over L.  Prefer a multiple of 256 (fills the 256-wide MXU on
    v6e/v7x), then 128, that divides L; otherwise the largest 128-aligned tile
    <= want (the last, partial column tile is handled by the cdiv grid)."""
    if L <= 128:
        return L
    want = max(want, 128)
    for base in (256, 128):
        t = (want // base) * base
        while t >= base:
            if L % t == 0:
                return t
            t -= base
    return min((want // 128) * 128, _round_up(L, 128))


def _const_spec(block_shape, single_buffer):
    """BlockSpec for an operand whose block never changes across the grid."""
    index_map = lambda *args: tuple(0 for _ in block_shape)
    if single_buffer:
        # Constant index_map => never re-DMA'd, so a second pipeline buffer is
        # pure VMEM waste.  Halves resident-weight VMEM (matters on v7x 64 MiB).
        return pl.BlockSpec(block_shape, index_map, pipeline_mode=pl.Buffered(1))
    return pl.BlockSpec(block_shape, index_map)


def vision_language_connector(x, w1, b1, w2, b2, *,
                              tile_m=None, tile_n=512,
                              single_buffer_weights=False,
                              _force_tiled=False):
    """VisionLanguageConnector forward.

    x: (B, N, D); w1: (D, H); b1: (H,); w2: (H, L); b2: (L,).
    Matmuls run in the dtype of x/w1/w2 (pass bf16 for MXU peak on v6e/v7x);
    accumulation, bias adds and ReLU stay in f32.
    """
    B, N, D = x.shape
    H = w1.shape[1]
    L = w2.shape[1]
    M = B * N
    out_dtype = x.dtype
    compute_dtype = jnp.result_type(x.dtype, w1.dtype, w2.dtype)

    dsize = jnp.dtype(compute_dtype).itemsize
    osize = jnp.dtype(out_dtype).itemsize
    sub = max(8, 32 // dsize)          # sublane alignment: 8 (f32) / 16 (bf16)

    vmem_cap = _vmem_capacity_bytes()
    vmem_budget = vmem_cap - (8 << 20)   # headroom for Mosaic internals
    bufw = 1 if single_buffer_weights else 2

    # Row tile: large enough that w2 traffic per row tile is amortized by MXU
    # work (v5e/v6e: 1024; v7x (64 MiB VMEM, 2 TCs): 512), clipped to the rows.
    if tile_m is None:
        tile_m = 1024 if vmem_cap >= (100 << 20) else 512
    tile_m = max(sub, min(_round_up(tile_m, sub), _round_up(M, sub)))
    # Keep >= 2 decent row tiles when M is big enough so both v7x cores get work.
    if M >= 512 and M <= tile_m:
        tile_m = _round_up(_cdiv(M, 2), sub)

    def fp_resident(tm):
        return (2 * tm * D * dsize                      # x tile (double-buffered)
                + bufw * (D * H * dsize + H * 4)        # w1 + b1 (resident)
                + bufw * (H * L * dsize + L * 4)        # w2 + b2 (resident)
                + 2 * tm * L * osize                    # out tile
                + tm * H * (4 + dsize))                 # f32 h temp + cast copy

    def fp_tiled(tm, tn):
        return (2 * tm * D * dsize
                + bufw * (D * H * dsize + H * 4)        # w1 + b1 (resident)
                + 2 * (H * tn * dsize + tn * 4)         # w2 / b2 column tile
                + 2 * tm * tn * osize
                + tm * H * dsize                        # h scratch (compute dtype)
                + tm * H * 4)                           # f32 h temp at j == 0

    # Prefer the resident-w2 path (w2 fetched once total); shrink tile_m if
    # needed.  Fall back to column tiling only when the weights don't fit.
    tm_min = min(256, _round_up(M, sub))
    use_resident = False
    if not _force_tiled:
        tm = tile_m
        while True:
            if fp_resident(tm) <= vmem_budget:
                use_resident = True
                tile_m = tm
                break
            if tm <= tm_min:
                break
            tm = max(tm_min, _round_up(tm // 2, sub))

    if not use_resident:
        tile_n = _pick_tile_n(L, tile_n)
        while fp_tiled(tile_m, tile_n) > vmem_budget and tile_m > tm_min:
            tile_m = max(tm_min, _round_up(tile_m // 2, sub))
        while fp_tiled(tile_m, tile_n) > vmem_budget and tile_n > 128:
            tile_n = max(128, _round_up(tile_n // 2, 128))
        # TODO(synk): for very large D or H (where resident w1 or the
        # (tile_m, H) h scratch alone exceed VMEM), add a K grid axis with an
        # f32 accumulator + pl.when init/finalize instead of whole-K blocks.

    x2d = x.reshape(M, D).astype(compute_dtype)
    w1c = w1.astype(compute_dtype)
    w2c = w2.astype(compute_dtype)
    b1_2d = b1.reshape(1, H).astype(jnp.float32)
    b2_2d = b2.reshape(1, L).astype(jnp.float32)

    grid_m = _cdiv(M, tile_m)

    if use_resident:
        grid = (grid_m,)
        in_specs = [
            pl.BlockSpec((tile_m, D), lambda i: (i, 0)),          # x row tile
            _const_spec((D, H), single_buffer_weights),           # w1 resident
            _const_spec((1, H), single_buffer_weights),           # b1 resident
            _const_spec((H, L), single_buffer_weights),           # w2 resident
            _const_spec((1, L), single_buffer_weights),           # b2 resident
        ]
        out_specs = pl.BlockSpec((tile_m, L), lambda i: (i, 0))
        scratch_shapes = []
        kernel = _mlp_kernel_resident
        semantics = ("parallel",)
        vmem_bytes = fp_resident(tile_m)
        w2_bytes = H * L * dsize                     # streamed exactly once
    else:
        grid_n = _cdiv(L, tile_n)
        grid = (grid_m, grid_n)
        in_specs = [
            pl.BlockSpec((tile_m, D), lambda i, j: (i, 0)),       # x row tile
            _const_spec((D, H), single_buffer_weights),           # w1 resident
            _const_spec((1, H), single_buffer_weights),           # b1 resident
            pl.BlockSpec((H, tile_n), lambda i, j: (0, j)),       # w2 col tile
            pl.BlockSpec((1, tile_n), lambda i, j: (0, j)),       # b2 col tile
        ]
        out_specs = pl.BlockSpec((tile_m, tile_n), lambda i, j: (i, j))
        scratch_shapes = [pltpu.VMEM((tile_m, H), compute_dtype)]
        kernel = _mlp_kernel_tiled
        semantics = ("parallel", "arbitrary")
        vmem_bytes = fp_tiled(tile_m, tile_n)
        w2_bytes = grid_m * H * L * dsize            # re-streamed per row tile

    vmem_limit = int(min(max(vmem_bytes + (4 << 20), 16 << 20),
                         vmem_cap - (8 << 20)))

    m_eff = grid_m * tile_m
    cost = pl.CostEstimate(
        flops=2 * m_eff * D * H + 2 * m_eff * H * L,
        transcendentals=0,
        bytes_accessed=(M * D * dsize + D * H * dsize + H * 4
                        + w2_bytes + L * 4 + M * L * osize),
    )

    out2d = pl.pallas_call(
        kernel,
        out_shape=jax.ShapeDtypeStruct((M, L), out_dtype),
        grid_spec=pltpu.PrefetchScalarGridSpec(
            num_scalar_prefetch=0,
            grid=grid,
            in_specs=in_specs,
            out_specs=out_specs,
            scratch_shapes=scratch_shapes,
        ),
        compiler_params=pltpu.CompilerParams(
            dimension_semantics=semantics,
            vmem_limit_bytes=vmem_limit),
        cost_estimate=cost,
    )(x2d, w1c, b1_2d, w2c, b2_2d)

    return out2d.reshape(B, N, L)


def _reference(x, w1, b1, w2, b2):
    B, N, D = x.shape
    h = jnp.maximum(x.reshape(-1, D) @ w1 + b1, 0.0)
    y = h @ w2 + b2
    return y.reshape(B, N, -1)


if __name__ == "__main__":
    # Small shapes consistent with the module's forward:
    # batch=2, num_visual_tokens=8, vision_embed_dim=32 -> hidden=128,
    # language_embed_dim=32.
    B, N, D = 2, 8, 32
    H = D * 4          # hidden_dim = vision_embed_dim * 4
    L = 32             # language_embed_dim

    key = jax.random.PRNGKey(0)
    kx, k1, k2, k3, k4 = jax.random.split(key, 5)

    x = jax.random.normal(kx, (B, N, D), dtype=jnp.float32)
    # Deterministic parameter init (synthetic weights, not a checkpoint load).
    w1 = jax.random.normal(k1, (D, H), dtype=jnp.float32) * (1.0 / D) ** 0.5
    b1 = jax.random.normal(k2, (H,), dtype=jnp.float32) * 0.01
    w2 = jax.random.normal(k3, (H, L), dtype=jnp.float32) * (1.0 / H) ** 0.5
    b2 = jax.random.normal(k4, (L,), dtype=jnp.float32) * 0.01

    ref = _reference(x, w1, b1, w2, b2)

    # f32 resident-weight path: strict numerical check against the reference.
    out = jax.block_until_ready(vision_language_connector(x, w1, b1, w2, b2))
    assert out.shape == (B, N, L)
    assert jnp.allclose(out, ref, atol=1e-4, rtol=1e-4)

    # bf16 matmul path (MXU-peak dtype on v6e/v7x); f32 accumulate + f32
    # bias/ReLU keep it within bf16 rounding of the f32 reference.
    out_bf16 = jax.block_until_ready(
        vision_language_connector(
            x.astype(jnp.bfloat16), w1.astype(jnp.bfloat16), b1,
            w2.astype(jnp.bfloat16), b2))
    assert out_bf16.shape == (B, N, L)
    assert jnp.allclose(out_bf16.astype(jnp.float32), ref, atol=5e-2, rtol=5e-2)

    # Structural check of the multi-tile / masked-partial-tile machinery and
    # the column-tiled fallback path (small shapes, forced tiling).
    B2, N2, D2 = 3, 100, 128                      # M = 300 -> 3 row tiles @128
    H2, L2 = D2 * 4, 256
    kx2, k5, k6, k7, k8 = jax.random.split(jax.random.PRNGKey(0), 5)
    x2 = jax.random.normal(kx2, (B2, N2, D2), dtype=jnp.float32)
    w1b = jax.random.normal(k5, (D2, H2), dtype=jnp.float32) * (1.0 / D2) ** 0.5
    b1b = jax.random.normal(k6, (H2,), dtype=jnp.float32) * 0.01
    w2b = jax.random.normal(k7, (H2, L2), dtype=jnp.float32) * (1.0 / H2) ** 0.5
    b2b = jax.random.normal(k8, (L2,), dtype=jnp.float32) * 0.01
    ref2 = _reference(x2, w1b, b1b, w2b, b2b)

    out_res = jax.block_until_ready(
        vision_language_connector(x2, w1b, b1b, w2b, b2b, tile_m=128))
    assert out_res.shape == (B2, N2, L2)
    assert jnp.allclose(out_res, ref2, atol=5e-3, rtol=5e-3)

    out_tiled = jax.block_until_ready(
        vision_language_connector(x2, w1b, b1b, w2b, b2b,
                                  tile_m=128, tile_n=128, _force_tiled=True))
    assert out_tiled.shape == (B2, N2, L2)
    assert jnp.allclose(out_tiled, ref2, atol=5e-3, rtol=5e-3)

    print("KERNEL_OK")
</pallas_src>

<mosaic_0001>
module attributes {stable_mosaic.version = 11 : i64} {
  func.func @_mlp_kernel_resident(%arg0: i32, %arg1: memref<16x32xf32, #tpu.memory_space<vmem>>, %arg2: memref<32x128xf32, #tpu.memory_space<vmem>>, %arg3: memref<1x128xf32, #tpu.memory_space<vmem>>, %arg4: memref<128x32xf32, #tpu.memory_space<vmem>>, %arg5: memref<1x32xf32, #tpu.memory_space<vmem>>, %arg6: memref<16x32xf32, #tpu.memory_space<vmem>>) attributes {dimension_semantics = [#tpu.dimension_semantics<parallel>], iteration_bounds = array<i64: 1>, scalar_prefetch = 0 : i64, scratch_operands = 0 : i64, tpu.core_type = #tpu.core_type<tc>, window_params = [{transform_indices = @transform_0, window_bounds = array<i64: 16, 32>}, {pipeline_mode = #tpu.pipeline_mode<synchronous>, transform_indices = @transform_1, window_bounds = array<i64: 32, 128>}, {pipeline_mode = #tpu.pipeline_mode<synchronous>, transform_indices = @transform_2, window_bounds = array<i64: 1, 128>}, {pipeline_mode = #tpu.pipeline_mode<synchronous>, transform_indices = @transform_3, window_bounds = array<i64: 128, 32>}, {pipeline_mode = #tpu.pipeline_mode<synchronous>, transform_indices = @transform_4, window_bounds = array<i64: 1, 32>}, {transform_indices = @transform_5, window_bounds = array<i64: 16, 32>}]} {
    %c0 = arith.constant 0 : index
    %c0_0 = arith.constant 0 : index
    %0 = vector.load %arg1[%c0, %c0_0] : memref<16x32xf32, #tpu.memory_space<vmem>>, vector<16x32xf32>
    %c0_1 = arith.constant 0 : index
    %c0_2 = arith.constant 0 : index
    %1 = vector.load %arg2[%c0_1, %c0_2] : memref<32x128xf32, #tpu.memory_space<vmem>>, vector<32x128xf32>
    %cst = arith.constant dense<0.000000e+00> : vector<16x128xf32>
    %2 = tpu.matmul %0, %1, %cst {dimension_numbers = #tpu.dot_dimension_numbers<[1], [0], [0], [1], [0, 0, 1, 1], [], []>} : vector<16x32xf32>, vector<32x128xf32>, vector<16x128xf32> -> vector<16x128xf32>
    %c0_3 = arith.constant 0 : index
    %c0_4 = arith.constant 0 : index
    %3 = vector.load %arg3[%c0_3, %c0_4] : memref<1x128xf32, #tpu.memory_space<vmem>>, vector<1x128xf32>
    %4 = vector.broadcast %3 : vector<1x128xf32> to vector<16x128xf32>
    %5 = arith.addf %2, %4 : vector<16x128xf32>
    %cst_5 = arith.constant 0.000000e+00 : f32
    %6 = vector.broadcast %cst_5 : f32 to vector<16x128xf32>
    %7 = arith.maximumf %5, %6 : vector<16x128xf32>
    %c0_6 = arith.constant 0 : index
    %c0_7 = arith.constant 0 : index
    %8 = vector.load %arg4[%c0_6, %c0_7] : memref<128x32xf32, #tpu.memory_space<vmem>>, vector<128x32xf32>
    %cst_8 = arith.constant dense<0.000000e+00> : vector<16x32xf32>
    %9 = tpu.matmul %7, %8, %cst_8 {dimension_numbers = #tpu.dot_dimension_numbers<[1], [0], [0], [1], [0, 0, 1, 1], [], []>} : vector<16x128xf32>, vector<128x32xf32>, vector<16x32xf32> -> vector<16x32xf32>
    %c0_9 = arith.constant 0 : index
    %c0_10 = arith.constant 0 : index
    %10 = vector.load %arg5[%c0_9, %c0_10] : memref<1x32xf32, #tpu.memory_space<vmem>>, vector<1x32xf32>
    %11 = vector.broadcast %10 : vector<1x32xf32> to vector<16x32xf32>
    %12 = arith.addf %9, %11 : vector<16x32xf32>
    %c0_11 = arith.constant 0 : index
    %c0_12 = arith.constant 0 : index
    %13 = vector.load %arg6[%c0_11, %c0_12] : memref<16x32xf32, #tpu.memory_space<vmem>>, vector<16x32xf32>
    tpu.vector_store %arg6[%c0_11, %c0_12], %12 {strides = array<i32>} : memref<16x32xf32, #tpu.memory_space<vmem>>, vector<16x32xf32>,
    return
  }
  func.func @transform_0(%arg0: i32) -> (i32, i32) {
    %c0_i32 = arith.constant 0 : i32
    %c0_i32_0 = arith.constant 0 : i32
    return %arg0, %c0_i32 : i32, i32
  }
  func.func @transform_1(%arg0: i32) -> (i32, i32) {
    %c0_i32 = arith.constant 0 : i32
    %c0_i32_0 = arith.constant 0 : i32
    %c0_i32_1 = arith.constant 0 : i32
    return %c0_i32, %c0_i32_0 : i32, i32
  }
  func.func @transform_2(%arg0: i32) -> (i32, i32) {
    %c0_i32 = arith.constant 0 : i32
    %c0_i32_0 = arith.constant 0 : i32
    %c0_i32_1 = arith.constant 0 : i32
    return %c0_i32, %c0_i32_0 : i32, i32
  }
  func.func @transform_3(%arg0: i32) -> (i32, i32) {
    %c0_i32 = arith.constant 0 : i32
    %c0_i32_0 = arith.constant 0 : i32
    %c0_i32_1 = arith.constant 0 : i32
    return %c0_i32, %c0_i32_0 : i32, i32
  }
  func.func @transform_4(%arg0: i32) -> (i32, i32) {
    %c0_i32 = arith.constant 0 : i32
    %c0_i32_0 = arith.constant 0 : i32
    %c0_i32_1 = arith.constant 0 : i32
    return %c0_i32, %c0_i32_0 : i32, i32
  }
  func.func @transform_5(%arg0: i32) -> (i32, i32) {
    %c0_i32 = arith.constant 0 : i32
    %c0_i32_0 = arith.constant 0 : i32
    return %arg0, %c0_i32 : i32, i32
  }
}

</mosaic_0001>

<llo_original>
// kernel: tpu_custom_call.1
$region0: #{tpu_custom_call.1}
  #allocation0 [shape = 'u32[]', space=smem, size = 0x4, offset = 0x4, fixed_abs, tag = 'smem constant byte address 0x4 - core index']
  #allocation1 [shape = 'u32[72,128]{1,0:T(1,128)}', space=vmem, size = 0x9000, scoped, tag = 'internal scratch']
  %s0 = inlined_call_operand.vmem [shape: f32[16,32], index: 0, kind: input, shape index: {}]
  %s1 = inlined_call_operand.vmem [shape: f32[32,128], index: 1, kind: input, shape index: {}]
  %s2 = inlined_call_operand.vmem [shape: f32[1,128], index: 2, kind: input, shape index: {}]
  %s3 = inlined_call_operand.vmem [shape: f32[128,32], index: 3, kind: input, shape index: {}]
  %s4 = inlined_call_operand.vmem [shape: f32[1,32], index: 4, kind: input, shape index: {}]
  %s5 = inlined_call_operand.hbm [shape: f32[16,32], index: 5, kind: output, shape index: {}]
  %s6 = sld [smem:[#allocation0]]
  $region30: #{tpu_custom_call.1} parent=0
    _
  %s8 = ssub.s32 1, %s6
  %s9 = scalar_select 0, %s8, %s6
  $region1: #{tpu_custom_call.1} parent=0
    #allocation2 [shape = 'u8[8192]{0}', space=vmem, size = 0x2000, scoped, tag = 'output window, operand 0, single buffered']
    #allocation3 [shape = 's32[1]{0}', space=sflag, size = 0x4, scoped, tag = 'scoped memory for tpu_custom_call.1']
    %10 = vsyncpa [#allocation3], 0
    // Predicated region
    $region2: #{tpu_custom_call.1} parent=1 // pred_check
      _
    $region3: #{tpu_custom_call.1} parent=1 // pred_check_branch
      %12 = sbr.rel (0) target = $region5
    $region4: #{tpu_custom_call.1} parent=1 // pred_region
      _
    $region5: #{tpu_custom_call.1} parent=1 // pred_fallthru
      _
    // Predicated region
    $region6: #{tpu_custom_call.1} parent=1 // pred_check
      _
    $region7: #{tpu_custom_call.1} parent=1 // pred_check_branch
      %14 = sbr.rel (0) target = $region9
    $region8: #{tpu_custom_call.1} parent=1 // pred_region
      _
    $region9: #{tpu_custom_call.1} parent=1 // pred_fallthru
      _
    // Predicated region
    $region10: #{tpu_custom_call.1} parent=1 // pred_check
      _
    $region11: #{tpu_custom_call.1} parent=1 // pred_check_branch
      %16 = sbr.rel (0) target = $region13
    $region12: #{tpu_custom_call.1} parent=1 // pred_region
      _
    $region13: #{tpu_custom_call.1} parent=1 // pred_fallthru
      _
    // Predicated region
    $region14: #{tpu_custom_call.1} parent=1 // pred_check
      _
    $region15: #{tpu_custom_call.1} parent=1 // pred_check_branch
      %18 = sbr.rel (0) target = $region17
    $region16: #{tpu_custom_call.1} parent=1 // pred_region
      _
    $region17: #{tpu_custom_call.1} parent=1 // pred_fallthru
      _
    // Predicated region
    $region18: #{tpu_custom_call.1} parent=1 // pred_check
      _
    $region19: #{tpu_custom_call.1} parent=1 // pred_check_branch
      %20 = sbr.rel (0) target = $region21
    $region20: #{tpu_custom_call.1} parent=1 // pred_region
      _
    $region21: #{tpu_custom_call.1} parent=1 // pred_fallthru
      _
    %v21 = vld [vmem:[%s0] sm:$0xff]
    %v22 = vld [vmem:[%s0 + $0x8] sm:$0xff]
    %v23 = vld [vmem:[%s1] sm:$0xff]
    %v24 = vld [vmem:[%s1 + $0x8] sm:$0xff]
    %v25 = vld [vmem:[%s1 + $0x10] sm:$0xff]
    %v26 = vld [vmem:[%s1 + $0x18] sm:$0xff]
    %v27 = vld [vmem:[%s2] sm:$0x1]
    %v29 = vperm.slane %v27, 0
    %vm31 = vcmask 261120
    %v33 = vsel %vm31, %v21, 0
    %v36 = vsel %vm31, %v22, 0
    %38 = vmatpush.msra.mxu0 0.0
    %39 = vmatpush.msra.mxu0 0.0
    %40 = vmatpush.msra.mxu0 0.0
    %41 = vmatpush.msra.mxu0 0.0
    %42 = vmatpush.msra.mxu0 0.0
    %43 = vmatpush.msra.mxu0 0.0
    %44 = vmatpush.msra.mxu0 0.0
    %45 = vmatpush.msra.mxu0 0.0
    %46 = vmatpush.msra.mxu0 0.0
    %47 = vmatpush.msra.mxu0 0.0
    %48 = vmatpush.msra.mxu0 0.0
    %49 = vmatpush.msra.mxu0 0.0
    %50 = vmatpush.msra.mxu0 %v26
    %51 = vmatpush.msra.mxu0 %v25
    %52 = vmatpush.msra.mxu0 %v24
    %53 = vmatpush.msra.mxu0 %v23
    %54 = vmatmul.f32.gmra.mxu0 %v33
    %v55 = vpop.f32.mrf.mxu0
    %v56 = vadd.f32 %v29, %v55
    %57 = vmatmul.f32.gmra.mxu0 %v36
    %v58 = vpop.f32.mrf.mxu0
    %v59 = vadd.f32 %v29, %v58
    %60 = vdwg.mxu0
    %v61 = vmax.f32 %v56, 0.0
    %v62 = vmax.f32 %v59, 0.0
    %v63 = vld [vmem:[%s3] sm:$0xff]
    %v64 = vld [vmem:[%s3 + $0x8] sm:$0xff]
    %v65 = vld [vmem:[%s3 + $0x10] sm:$0xff]
    %v66 = vld [vmem:[%s3 + $0x18] sm:$0xff]
    %v67 = vld [vmem:[%s3 + $0x20] sm:$0xff]
    %v68 = vld [vmem:[%s3 + $0x28] sm:$0xff]
    %v69 = vld [vmem:[%s3 + $0x30] sm:$0xff]
    %v70 = vld [vmem:[%s3 + $0x38] sm:$0xff]
    %v71 = vld [vmem:[%s3 + $0x40] sm:$0xff]
    %v72 = vld [vmem:[%s3 + $0x48] sm:$0xff]
    %v73 = vld [vmem:[%s3 + $0x50] sm:$0xff]
    %v74 = vld [vmem:[%s3 + $0x58] sm:$0xff]
    %v75 = vld [vmem:[%s3 + $0x60] sm:$0xff]
    %v76 = vld [vmem:[%s3 + $0x68] sm:$0xff]
    %v77 = vld [vmem:[%s3 + $0x70] sm:$0xff]
    %v78 = vld [vmem:[%s3 + $0x78] sm:$0xff]
    %v79 = vld [vmem:[%s4] sm:$0x1]
    %v81 = vperm.slane %v79, 0
    %83 = vmatpush.msra.mxu0 %v78
    %84 = vmatpush.msra.mxu0 %v77
    %85 = vmatpush.msra.mxu0 %v76
    %86 = vmatpush.msra.mxu0 %v75
    %87 = vmatpush.msra.mxu0 %v74
    %88 = vmatpush.msra.mxu0 %v73
    %89 = vmatpush.msra.mxu0 %v72
    %90 = vmatpush.msra.mxu0 %v71
    %91 = vmatpush.msra.mxu0 %v70
    %92 = vmatpush.msra.mxu0 %v69
    %93 = vmatpush.msra.mxu0 %v68
    %94 = vmatpush.msra.mxu0 %v67
    %95 = vmatpush.msra.mxu0 %v66
    %96 = vmatpush.msra.mxu0 %v65
    %97 = vmatpush.msra.mxu0 %v64
    %98 = vmatpush.msra.mxu0 %v63
    %99 = vmatmul.f32.gmra.mxu0 %v61
    %v100 = vpop.f32.mrf.mxu0
    %v101 = vadd.f32 %v81, %v100
    %102 = vmatmul.f32.gmra.mxu0 %v62
    %v103 = vpop.f32.mrf.mxu0
    %v104 = vadd.f32 %v81, %v103
    %105 = vdwg.mxu0
    %106 = vst.msk [vmem:[#allocation2] sm:$0xff] %vm31, %v101
    %107 = vst.msk [vmem:[#allocation2 + $0x8] sm:$0xff] %vm31, %v104
    // Predicated region
    $region22: #{tpu_custom_call.1} parent=1 // pred_check
      _
    $region23: #{tpu_custom_call.1} parent=1 // pred_check_branch
      %109 = sbr.rel (0) target = $region25
    $region24: #{tpu_custom_call.1} parent=1 // pred_region
      %111 = vsyncadd [#allocation3], 0
      %s112 = sshll.u32 [#allocation2], 4
      %s113 = int_to_ptr.vmem [resolvable:$true] %s112
      %s114 = sshll.u32 %s5, 4
      %s115 = int_to_ptr.hbm [resolvable:$true] %s114
      %120 = dma.vmem_to_hbm [thread:$0]  %s113, 256, %s115, [#allocation3], 128, 128, 8
    $region25: #{tpu_custom_call.1} parent=1 // pred_fallthru
      _
    // Predicated region
    $region26: #{tpu_custom_call.1} parent=1 // pred_check
      _
    $region27: #{tpu_custom_call.1} parent=1 // pred_check_branch
      %122 = sbr.rel (0) target = $region29
    $region28: #{tpu_custom_call.1} parent=1 // pred_region
      %124 = dma.done [#allocation3], 256
    $region29: #{tpu_custom_call.1} parent=1 // pred_fallthru
      _
    %125 = vsyncpa [#allocation3], 1

</llo_original>
